<compile_context>
chip_gen: v5e
topology: v5e:2x2
jax: 0.10.0
libtpu: 0.0.40
codegen_flags: <defaults>
</compile_context>

<pallas_src>
import jax
import jax.numpy as jnp
from jax.experimental import pallas as pl
from jax.experimental.pallas import tpu as pltpu

LEAKY_SLOPE = 0.01  # PyTorch F.leaky_relu default negative_slope
HIDDEN = 128


def _leaky_relu(x):
    # max(x, 0.01*x) == leaky_relu(x) for slope < 1; mul+max on the VPU.
    return jnp.maximum(x, LEAKY_SLOPE * x)


def poker_agent_kernel(x_ref,
                       w1_ref, b1_ref,
                       w2_ref, b2_ref,
                       w3_ref, b3_ref,
                       w4_ref, b4_ref,
                       w5_ref, b5_ref,
                       o_ref):
    """Fused 5-layer MLP on one batch tile: 5 MXU matmuls + VPU activations."""

    def layer(h, w_ref, b_ref):
        # Cast activations only at the dot boundary (no-op for f32 weights);
        # accumulate in f32, add f32 bias, keep f32 between layers so the
        # leaky_relu runs in f32 on the VPU (v5e-safe).
        return jnp.dot(h.astype(w_ref.dtype), w_ref[...],
                       preferred_element_type=jnp.float32) + b_ref[...]

    h = x_ref[...].astype(jnp.float32)
    h = _leaky_relu(layer(h, w1_ref, b1_ref))
    h = _leaky_relu(layer(h, w2_ref, b2_ref))
    h = _leaky_relu(layer(h, w3_ref, b3_ref))
    h = _leaky_relu(layer(h, w4_ref, b4_ref))
    out = jnp.maximum(layer(h, w5_ref, b5_ref), 0.0)   # lane-padded in VMEM
    # Store only the real output columns (compact HBM writeback).
    o_ref[...] = out[:, :o_ref.shape[-1]].astype(o_ref.dtype)


def _pick_tile_b(batch, *, max_tile=1024, single_step_max=256):
    """Adaptive batch tile: single step for tiny batches, >=2 programs else."""
    b128 = pl.cdiv(batch, 128) * 128          # minimal sublane-friendly pad
    if b128 <= single_step_max:
        return b128                            # one grid step: overhead bound
    half = pl.cdiv(pl.cdiv(b128, 2), 128) * 128
    return max(128, min(max_tile, half))       # keeps grid >= 2 (v7x megacore)


def poker_agent_forward(x, params, *, tile_b=None, max_tile_b=1024,
                        compute_dtype=jnp.bfloat16):
    """x: [B, state_size] float32. params: dict of W/b arrays (W as [in, out]).

    Returns [B, action_size + 1] float32.
    compute_dtype: dtype of weights / dot inputs (bf16 halves weight streaming
    and feeds the bf16 MXU natively; accumulation stays f32 either way).
    """
    B, S = x.shape
    out_dim = params["w5"].shape[1]                 # action_size + 1
    out_pad = pl.cdiv(out_dim, 128) * 128           # lane-dense MXU width only

    # Pad the final layer to a lane-dense width for the matmul (VMEM only:
    # the padded columns are never written to HBM; relu(0)=0 is inert).
    w5 = jnp.zeros((HIDDEN, out_pad), jnp.float32).at[:, :out_dim].set(
        params["w5"])
    b5 = jnp.zeros((1, out_pad), jnp.float32).at[:, :out_dim].set(params["b5"])

    # --- pick batch tile & pad batch up to a multiple of it ---
    if tile_b is None:
        tile_b = _pick_tile_b(B, max_tile=max_tile_b)
    b_pad = pl.cdiv(B, tile_b) * tile_b
    xp = x if b_pad == B else jnp.pad(x, ((0, b_pad - B), (0, 0)))

    weights = (
        params["w1"].astype(compute_dtype), params["b1"],
        params["w2"].astype(compute_dtype), params["b2"],
        params["w3"].astype(compute_dtype), params["b3"],
        params["w4"].astype(compute_dtype), params["b4"],
        w5.astype(compute_dtype), b5,
    )

    grid = (b_pad // tile_b,)

    def _const_block(i):          # weights/biases: same block for every tile
        return (0, 0)

    def _batch_block(i):          # x / out: tiled along the batch axis
        return (i, 0)

    in_specs = [pl.BlockSpec((tile_b, S), _batch_block)]
    for w in weights:
        in_specs.append(pl.BlockSpec(w.shape, _const_block))
    # Compact output block: last dim equals the full array dim, so it's legal
    # even though it is < 128 lanes; the writeback DMA is tiny.
    out_specs = pl.BlockSpec((tile_b, out_dim), _batch_block)

    flops = 2 * b_pad * (S * HIDDEN + 3 * HIDDEN * HIDDEN + HIDDEN * out_pad)
    bytes_accessed = (xp.size * xp.dtype.itemsize
                      + sum(w.size * w.dtype.itemsize for w in weights)
                      + b_pad * out_dim * 4)

    out = pl.pallas_call(
        poker_agent_kernel,
        out_shape=jax.ShapeDtypeStruct((b_pad, out_dim), jnp.float32),
        grid=grid,
        in_specs=in_specs,
        out_specs=out_specs,
        compiler_params=pltpu.CompilerParams(
            dimension_semantics=("parallel",)),
        cost_estimate=pl.CostEstimate(
            flops=flops, transcendentals=0, bytes_accessed=bytes_accessed),
    )(xp, *weights)

    return out if b_pad == B else out[:B]


def init_params(key, state_size, action_size):
    """Deterministic PyTorch-style init: U(-1/sqrt(fan_in), 1/sqrt(fan_in))."""
    dims = [(state_size, HIDDEN), (HIDDEN, HIDDEN), (HIDDEN, HIDDEN),
            (HIDDEN, HIDDEN), (HIDDEN, action_size + 1)]
    params = {}
    for i, (fan_in, fan_out) in enumerate(dims, start=1):
        key, kw, kb = jax.random.split(key, 3)
        bound = 1.0 / jnp.sqrt(jnp.float32(fan_in))
        params[f"w{i}"] = jax.random.uniform(
            kw, (fan_in, fan_out), jnp.float32, -bound, bound)
        params[f"b{i}"] = jax.random.uniform(
            kb, (1, fan_out), jnp.float32, -bound, bound)
    return params


def reference_forward(x, params):
    """Pure-JAX reference (HIGHEST matmul precision to avoid TPU bf16 dots)."""
    h = x
    for i in range(1, 5):
        z = jnp.dot(h, params[f"w{i}"],
                    precision=jax.lax.Precision.HIGHEST) + params[f"b{i}"]
        h = jax.nn.leaky_relu(z, negative_slope=LEAKY_SLOPE)
    z = jnp.dot(h, params["w5"],
                precision=jax.lax.Precision.HIGHEST) + params["b5"]
    return jax.nn.relu(z)


# TODO(synk): PokerAgent.act() (epsilon-greedy with Python RNG + argmax over
# the outputs) is host-side control flow; it stays outside the kernel.

if __name__ == "__main__":
    state_size = 32
    action_size = 3          # output layer produces action_size + 1 = 4 values

    key = jax.random.PRNGKey(0)
    key, kx = jax.random.split(key)
    params = init_params(key, state_size, action_size)

    # --- small batch: single grid step (overhead-bound regime) ---
    batch = 200              # deliberately not a multiple of the batch tile
    x = jax.random.normal(kx, (batch, state_size), jnp.float32)
    ref = reference_forward(x, params)

    out_f32 = jax.block_until_ready(
        poker_agent_forward(x, params, compute_dtype=jnp.float32))
    assert out_f32.shape == (batch, action_size + 1)
    assert jnp.allclose(out_f32, ref, atol=1e-4, rtol=1e-4), \
        "f32 kernel mismatch vs reference"

    out_bf16 = jax.block_until_ready(poker_agent_forward(x, params))
    assert out_bf16.shape == (batch, action_size + 1)
    assert jnp.allclose(out_bf16, ref, atol=5e-2, rtol=5e-2), \
        "bf16 kernel mismatch vs reference"

    # --- larger batch: exercises a >=2-program grid (v7x megacore path) and
    #     batch zero-padding inside the last tile ---
    batch2 = 300
    x2 = jax.random.normal(jax.random.PRNGKey(1), (batch2, state_size),
                           jnp.float32)
    ref2 = reference_forward(x2, params)
    out2 = jax.block_until_ready(
        poker_agent_forward(x2, params, compute_dtype=jnp.float32))
    assert out2.shape == (batch2, action_size + 1)
    assert jnp.allclose(out2, ref2, atol=1e-4, rtol=1e-4), \
        "multi-tile kernel mismatch vs reference"

    print("KERNEL_OK")
</pallas_src>

<mosaic_0001>
module attributes {stable_mosaic.version = 11 : i64} {
  func.func @poker_agent_kernel(%arg0: i32, %arg1: memref<256x32xf32, #tpu.memory_space<vmem>>, %arg2: memref<32x128xf32, #tpu.memory_space<vmem>>, %arg3: memref<1x128xf32, #tpu.memory_space<vmem>>, %arg4: memref<128x128xf32, #tpu.memory_space<vmem>>, %arg5: memref<1x128xf32, #tpu.memory_space<vmem>>, %arg6: memref<128x128xf32, #tpu.memory_space<vmem>>, %arg7: memref<1x128xf32, #tpu.memory_space<vmem>>, %arg8: memref<128x128xf32, #tpu.memory_space<vmem>>, %arg9: memref<1x128xf32, #tpu.memory_space<vmem>>, %arg10: memref<128x128xf32, #tpu.memory_space<vmem>>, %arg11: memref<1x128xf32, #tpu.memory_space<vmem>>, %arg12: memref<256x4xf32, #tpu.memory_space<vmem>>) attributes {dimension_semantics = [#tpu.dimension_semantics<parallel>], iteration_bounds = array<i64: 1>, scalar_prefetch = 0 : i64, scratch_operands = 0 : i64, tpu.core_type = #tpu.core_type<tc>, window_params = [{transform_indices = @transform_0, window_bounds = array<i64: 256, 32>}, {pipeline_mode = #tpu.pipeline_mode<synchronous>, transform_indices = @transform_1, window_bounds = array<i64: 32, 128>}, {pipeline_mode = #tpu.pipeline_mode<synchronous>, transform_indices = @transform_2, window_bounds = array<i64: 1, 128>}, {pipeline_mode = #tpu.pipeline_mode<synchronous>, transform_indices = @transform_3, window_bounds = array<i64: 128, 128>}, {pipeline_mode = #tpu.pipeline_mode<synchronous>, transform_indices = @transform_4, window_bounds = array<i64: 1, 128>}, {pipeline_mode = #tpu.pipeline_mode<synchronous>, transform_indices = @transform_5, window_bounds = array<i64: 128, 128>}, {pipeline_mode = #tpu.pipeline_mode<synchronous>, transform_indices = @transform_6, window_bounds = array<i64: 1, 128>}, {pipeline_mode = #tpu.pipeline_mode<synchronous>, transform_indices = @transform_7, window_bounds = array<i64: 128, 128>}, {pipeline_mode = #tpu.pipeline_mode<synchronous>, transform_indices = @transform_8, window_bounds = array<i64: 1, 128>}, {pipeline_mode = #tpu.pipeline_mode<synchronous>, transform_indices = @transform_9, window_bounds = array<i64: 128, 128>}, {pipeline_mode = #tpu.pipeline_mode<synchronous>, transform_indices = @transform_10, window_bounds = array<i64: 1, 128>}, {transform_indices = @transform_11, window_bounds = array<i64: 256, 4>}]} {
    %c0 = arith.constant 0 : index
    %c0_0 = arith.constant 0 : index
    %0 = vector.load %arg1[%c0, %c0_0] : memref<256x32xf32, #tpu.memory_space<vmem>>, vector<256x32xf32>
    %c0_1 = arith.constant 0 : index
    %c0_2 = arith.constant 0 : index
    %1 = vector.load %arg2[%c0_1, %c0_2] : memref<32x128xf32, #tpu.memory_space<vmem>>, vector<32x128xf32>
    %cst = arith.constant dense<0.000000e+00> : vector<256x128xf32>
    %2 = tpu.matmul %0, %1, %cst {dimension_numbers = #tpu.dot_dimension_numbers<[1], [0], [0], [1], [0, 0, 1, 1], [], []>} : vector<256x32xf32>, vector<32x128xf32>, vector<256x128xf32> -> vector<256x128xf32>
    %c0_3 = arith.constant 0 : index
    %c0_4 = arith.constant 0 : index
    %3 = vector.load %arg3[%c0_3, %c0_4] : memref<1x128xf32, #tpu.memory_space<vmem>>, vector<1x128xf32>
    %4 = vector.broadcast %3 : vector<1x128xf32> to vector<256x128xf32>
    %5 = arith.addf %2, %4 : vector<256x128xf32>
    %cst_5 = arith.constant 0.00999999977 : f32
    %6 = vector.broadcast %cst_5 : f32 to vector<256x128xf32>
    %7 = arith.mulf %6, %5 : vector<256x128xf32>
    %8 = arith.maximumf %5, %7 : vector<256x128xf32>
    %c0_6 = arith.constant 0 : index
    %c0_7 = arith.constant 0 : index
    %9 = vector.load %arg4[%c0_6, %c0_7] : memref<128x128xf32, #tpu.memory_space<vmem>>, vector<128x128xf32>
    %cst_8 = arith.constant dense<0.000000e+00> : vector<256x128xf32>
    %10 = tpu.matmul %8, %9, %cst_8 {dimension_numbers = #tpu.dot_dimension_numbers<[1], [0], [0], [1], [0, 0, 1, 1], [], []>} : vector<256x128xf32>, vector<128x128xf32>, vector<256x128xf32> -> vector<256x128xf32>
    %c0_9 = arith.constant 0 : index
    %c0_10 = arith.constant 0 : index
    %11 = vector.load %arg5[%c0_9, %c0_10] : memref<1x128xf32, #tpu.memory_space<vmem>>, vector<1x128xf32>
    %12 = vector.broadcast %11 : vector<1x128xf32> to vector<256x128xf32>
    %13 = arith.addf %10, %12 : vector<256x128xf32>
    %cst_11 = arith.constant 0.00999999977 : f32
    %14 = vector.broadcast %cst_11 : f32 to vector<256x128xf32>
    %15 = arith.mulf %14, %13 : vector<256x128xf32>
    %16 = arith.maximumf %13, %15 : vector<256x128xf32>
    %c0_12 = arith.constant 0 : index
    %c0_13 = arith.constant 0 : index
    %17 = vector.load %arg6[%c0_12, %c0_13] : memref<128x128xf32, #tpu.memory_space<vmem>>, vector<128x128xf32>
    %cst_14 = arith.constant dense<0.000000e+00> : vector<256x128xf32>
    %18 = tpu.matmul %16, %17, %cst_14 {dimension_numbers = #tpu.dot_dimension_numbers<[1], [0], [0], [1], [0, 0, 1, 1], [], []>} : vector<256x128xf32>, vector<128x128xf32>, vector<256x128xf32> -> vector<256x128xf32>
    %c0_15 = arith.constant 0 : index
    %c0_16 = arith.constant 0 : index
    %19 = vector.load %arg7[%c0_15, %c0_16] : memref<1x128xf32, #tpu.memory_space<vmem>>, vector<1x128xf32>
    %20 = vector.broadcast %19 : vector<1x128xf32> to vector<256x128xf32>
    %21 = arith.addf %18, %20 : vector<256x128xf32>
    %cst_17 = arith.constant 0.00999999977 : f32
    %22 = vector.broadcast %cst_17 : f32 to vector<256x128xf32>
    %23 = arith.mulf %22, %21 : vector<256x128xf32>
    %24 = arith.maximumf %21, %23 : vector<256x128xf32>
    %c0_18 = arith.constant 0 : index
    %c0_19 = arith.constant 0 : index
    %25 = vector.load %arg8[%c0_18, %c0_19] : memref<128x128xf32, #tpu.memory_space<vmem>>, vector<128x128xf32>
    %cst_20 = arith.constant dense<0.000000e+00> : vector<256x128xf32>
    %26 = tpu.matmul %24, %25, %cst_20 {dimension_numbers = #tpu.dot_dimension_numbers<[1], [0], [0], [1], [0, 0, 1, 1], [], []>} : vector<256x128xf32>, vector<128x128xf32>, vector<256x128xf32> -> vector<256x128xf32>
    %c0_21 = arith.constant 0 : index
    %c0_22 = arith.constant 0 : index
    %27 = vector.load %arg9[%c0_21, %c0_22] : memref<1x128xf32, #tpu.memory_space<vmem>>, vector<1x128xf32>
    %28 = vector.broadcast %27 : vector<1x128xf32> to vector<256x128xf32>
    %29 = arith.addf %26, %28 : vector<256x128xf32>
    %cst_23 = arith.constant 0.00999999977 : f32
    %30 = vector.broadcast %cst_23 : f32 to vector<256x128xf32>
    %31 = arith.mulf %30, %29 : vector<256x128xf32>
    %32 = arith.maximumf %29, %31 : vector<256x128xf32>
    %c0_24 = arith.constant 0 : index
    %c0_25 = arith.constant 0 : index
    %33 = vector.load %arg10[%c0_24, %c0_25] : memref<128x128xf32, #tpu.memory_space<vmem>>, vector<128x128xf32>
    %cst_26 = arith.constant dense<0.000000e+00> : vector<256x128xf32>
    %34 = tpu.matmul %32, %33, %cst_26 {dimension_numbers = #tpu.dot_dimension_numbers<[1], [0], [0], [1], [0, 0, 1, 1], [], []>} : vector<256x128xf32>, vector<128x128xf32>, vector<256x128xf32> -> vector<256x128xf32>
    %c0_27 = arith.constant 0 : index
    %c0_28 = arith.constant 0 : index
    %35 = vector.load %arg11[%c0_27, %c0_28] : memref<1x128xf32, #tpu.memory_space<vmem>>, vector<1x128xf32>
    %36 = vector.broadcast %35 : vector<1x128xf32> to vector<256x128xf32>
    %37 = arith.addf %34, %36 : vector<256x128xf32>
    %cst_29 = arith.constant 0.000000e+00 : f32
    %38 = vector.broadcast %cst_29 : f32 to vector<256x128xf32>
    %39 = arith.maximumf %37, %38 : vector<256x128xf32>
    %40 = vector.extract_strided_slice %39 {offsets = [0, 0], sizes = [256, 4], strides = [1, 1]} : vector<256x128xf32> to vector<256x4xf32>
    %c0_30 = arith.constant 0 : index
    %c0_31 = arith.constant 0 : index
    %41 = vector.load %arg12[%c0_30, %c0_31] : memref<256x4xf32, #tpu.memory_space<vmem>>, vector<256x4xf32>
    tpu.vector_store %arg12[%c0_30, %c0_31], %40 {strides = array<i32>} : memref<256x4xf32, #tpu.memory_space<vmem>>, vector<256x4xf32>,
    return
  }
  func.func @transform_0(%arg0: i32) -> (i32, i32) {
    %c0_i32 = arith.constant 0 : i32
    %c0_i32_0 = arith.constant 0 : i32
    return %arg0, %c0_i32 : i32, i32
  }
  func.func @transform_1(%arg0: i32) -> (i32, i32) {
    %c0_i32 = arith.constant 0 : i32
    %c0_i32_0 = arith.constant 0 : i32
    %c0_i32_1 = arith.constant 0 : i32
    return %c0_i32, %c0_i32_0 : i32, i32
  }
  func.func @transform_2(%arg0: i32) -> (i32, i32) {
    %c0_i32 = arith.constant 0 : i32
    %c0_i32_0 = arith.constant 0 : i32
    %c0_i32_1 = arith.constant 0 : i32
    return %c0_i32, %c0_i32_0 : i32, i32
  }
  func.func @transform_3(%arg0: i32) -> (i32, i32) {
    %c0_i32 = arith.constant 0 : i32
    %c0_i32_0 = arith.constant 0 : i32
    %c0_i32_1 = arith.constant 0 : i32
    return %c0_i32, %c0_i32_0 : i32, i32
  }
  func.func @transform_4(%arg0: i32) -> (i32, i32) {
    %c0_i32 = arith.constant 0 : i32
    %c0_i32_0 = arith.constant 0 : i32
    %c0_i32_1 = arith.constant 0 : i32
    return %c0_i32, %c0_i32_0 : i32, i32
  }
  func.func @transform_5(%arg0: i32) -> (i32, i32) {
    %c0_i32 = arith.constant 0 : i32
    %c0_i32_0 = arith.constant 0 : i32
    %c0_i32_1 = arith.constant 0 : i32
    return %c0_i32, %c0_i32_0 : i32, i32
  }
  func.func @transform_6(%arg0: i32) -> (i32, i32) {
    %c0_i32 = arith.constant 0 : i32
    %c0_i32_0 = arith.constant 0 : i32
    %c0_i32_1 = arith.constant 0 : i32
    return %c0_i32, %c0_i32_0 : i32, i32
  }
  func.func @transform_7(%arg0: i32) -> (i32, i32) {
    %c0_i32 = arith.constant 0 : i32
    %c0_i32_0 = arith.constant 0 : i32
    %c0_i32_1 = arith.constant 0 : i32
    return %c0_i32, %c0_i32_0 : i32, i32
  }
  func.func @transform_8(%arg0: i32) -> (i32, i32) {
    %c0_i32 = arith.constant 0 : i32
    %c0_i32_0 = arith.constant 0 : i32
    %c0_i32_1 = arith.constant 0 : i32
    return %c0_i32, %c0_i32_0 : i32, i32
  }
  func.func @transform_9(%arg0: i32) -> (i32, i32) {
    %c0_i32 = arith.constant 0 : i32
    %c0_i32_0 = arith.constant 0 : i32
    %c0_i32_1 = arith.constant 0 : i32
    return %c0_i32, %c0_i32_0 : i32, i32
  }
  func.func @transform_10(%arg0: i32) -> (i32, i32) {
    %c0_i32 = arith.constant 0 : i32
    %c0_i32_0 = arith.constant 0 : i32
    %c0_i32_1 = arith.constant 0 : i32
    return %c0_i32, %c0_i32_0 : i32, i32
  }
  func.func @transform_11(%arg0: i32) -> (i32, i32) {
    %c0_i32 = arith.constant 0 : i32
    %c0_i32_0 = arith.constant 0 : i32
    return %arg0, %c0_i32 : i32, i32
  }
}

</mosaic_0001>

<llo_original>
// kernel: tpu_custom_call.1
$region0: #{tpu_custom_call.1}
  #allocation0 [shape = 'u32[]', space=smem, size = 0x4, offset = 0x4, fixed_abs, tag = 'smem constant byte address 0x4 - core index']
  #allocation1 [shape = 'u32[72,128]{1,0:T(1,128)}', space=vmem, size = 0x9000, scoped, tag = 'internal scratch']
  %s0 = inlined_call_operand.vmem [shape: f32[256,32], index: 0, kind: input, shape index: {}]
  %s1 = inlined_call_operand.vmem [shape: f32[32,128], index: 1, kind: input, shape index: {}]
  %s2 = inlined_call_operand.vmem [shape: f32[1,128], index: 2, kind: input, shape index: {}]
  %s3 = inlined_call_operand.vmem [shape: f32[128,128], index: 3, kind: input, shape index: {}]
  %s4 = inlined_call_operand.vmem [shape: f32[1,128], index: 4, kind: input, shape index: {}]
  %s5 = inlined_call_operand.vmem [shape: f32[128,128], index: 5, kind: input, shape index: {}]
  %s6 = inlined_call_operand.vmem [shape: f32[1,128], index: 6, kind: input, shape index: {}]
  %s7 = inlined_call_operand.hbm [shape: f32[128,128], index: 7, kind: input, shape index: {}]
  %s8 = inlined_call_operand.vmem [shape: f32[1,128], index: 8, kind: input, shape index: {}]
  %s9 = inlined_call_operand.hbm [shape: f32[128,128], index: 9, kind: input, shape index: {}]
  %s10 = inlined_call_operand.vmem [shape: f32[1,128], index: 10, kind: input, shape index: {}]
  %s11 = inlined_call_operand.vmem [shape: f32[256,4], index: 11, kind: output, shape index: {}]
  %s12 = sld [smem:[#allocation0]]
  $region62: #{tpu_custom_call.1} parent=0
    _
  %s14 = ssub.s32 1, %s12
  %s15 = scalar_select 0, %s14, %s12
  $region1: #{tpu_custom_call.1} parent=0
    #allocation2 [shape = 'u8[65536]{0}', space=vmem, size = 0x10000, scoped, tag = 'input window, operand 7, single buffered']
    #allocation3 [shape = 's32[1]{0}', space=sflag, size = 0x4, scoped, tag = 'scoped memory for tpu_custom_call.1']
    #allocation4 [shape = 'u8[65536]{0}', space=vmem, size = 0x10000, scoped, tag = 'input window, operand 9, single buffered']
    #allocation5 [shape = 's32[1]{0}', space=sflag, size = 0x4, scoped, tag = 'scoped memory for tpu_custom_call.1']
    %16 = vsyncpa [#allocation3], 0
    %17 = vsyncpa [#allocation5], 0
    // Predicated region
    $region2: #{tpu_custom_call.1} parent=1 // pred_check
      _
    $region3: #{tpu_custom_call.1} parent=1 // pred_check_branch
      %19 = sbr.rel (0) target = $region5
    $region4: #{tpu_custom_call.1} parent=1 // pred_region
      _
    $region5: #{tpu_custom_call.1} parent=1 // pred_fallthru
      _
    // Predicated region
    $region6: #{tpu_custom_call.1} parent=1 // pred_check
      _
    $region7: #{tpu_custom_call.1} parent=1 // pred_check_branch
      %21 = sbr.rel (0) target = $region9
    $region8: #{tpu_custom_call.1} parent=1 // pred_region
      _
    $region9: #{tpu_custom_call.1} parent=1 // pred_fallthru
      _
    // Predicated region
    $region10: #{tpu_custom_call.1} parent=1 // pred_check
      _
    $region11: #{tpu_custom_call.1} parent=1 // pred_check_branch
      %23 = sbr.rel (0) target = $region13
    $region12: #{tpu_custom_call.1} parent=1 // pred_region
      _
    $region13: #{tpu_custom_call.1} parent=1 // pred_fallthru
      _
    // Predicated region
    $region14: #{tpu_custom_call.1} parent=1 // pred_check
      _
    $region15: #{tpu_custom_call.1} parent=1 // pred_check_branch
      %25 = sbr.rel (0) target = $region17
    $region16: #{tpu_custom_call.1} parent=1 // pred_region
      _
    $region17: #{tpu_custom_call.1} parent=1 // pred_fallthru
      _
    // Predicated region
    $region18: #{tpu_custom_call.1} parent=1 // pred_check
      _
    $region19: #{tpu_custom_call.1} parent=1 // pred_check_branch
      %27 = sbr.rel (0) target = $region21
    $region20: #{tpu_custom_call.1} parent=1 // pred_region
      _
    $region21: #{tpu_custom_call.1} parent=1 // pred_fallthru
      _
    // Predicated region
    $region22: #{tpu_custom_call.1} parent=1 // pred_check
      _
    $region23: #{tpu_custom_call.1} parent=1 // pred_check_branch
      %29 = sbr.rel (0) target = $region25
    $region24: #{tpu_custom_call.1} parent=1 // pred_region
      _
    $region25: #{tpu_custom_call.1} parent=1 // pred_fallthru
      _
    // Predicated region
    $region26: #{tpu_custom_call.1} parent=1 // pred_check
      _
    $region27: #{tpu_custom_call.1} parent=1 // pred_check_branch
      %31 = sbr.rel (0) target = $region29
    $region28: #{tpu_custom_call.1} parent=1 // pred_region
      _
    $region29: #{tpu_custom_call.1} parent=1 // pred_fallthru
      _
    // Predicated region
    $region30: #{tpu_custom_call.1} parent=1 // pred_check
      _
    $region31: #{tpu_custom_call.1} parent=1 // pred_check_branch
      %33 = sbr.rel (0) target = $region33
    $region32: #{tpu_custom_call.1} parent=1 // pred_region
      %35 = vsyncadd [#allocation3], 0
      %s36 = sshll.u32 %s7, 4
      %s37 = int_to_ptr.hbm [resolvable:$true] %s36
      %s38 = sshll.u32 [#allocation2], 4
      %s39 = int_to_ptr.vmem [resolvable:$true] %s38
      %44 = dma.hbm_to_vmem [thread:$0]  %s37, 2048, %s39, [#allocation3], 128, 128, 8
    $region33: #{tpu_custom_call.1} parent=1 // pred_fallthru
      _
    // Predicated region
    $region34: #{tpu_custom_call.1} parent=1 // pred_check
      _
    $region35: #{tpu_custom_call.1} parent=1 // pred_check_branch
      %46 = sbr.rel (0) target = $region37
    $region36: #{tpu_custom_call.1} parent=1 // pred_region
      _
    $region37: #{tpu_custom_call.1} parent=1 // pred_fallthru
      _
    // Predicated region
    $region38: #{tpu_custom_call.1} parent=1 // pred_check
      _
    $region39: #{tpu_custom_call.1} parent=1 // pred_check_branch
      %48 = sbr.rel (0) target = $region41
    $region40: #{tpu_custom_call.1} parent=1 // pred_region
      %50 = vsyncadd [#allocation5], 0
      %s51 = sshll.u32 %s9, 4
      %s52 = int_to_ptr.hbm [resolvable:$true] %s51
      %s53 = sshll.u32 [#allocation4], 4
      %s54 = int_to_ptr.vmem [resolvable:$true] %s53
      %59 = dma.hbm_to_vmem [thread:$0]  %s52, 2048, %s54, [#allocation5], 128, 128, 8
    $region41: #{tpu_custom_call.1} parent=1 // pred_fallthru
      _
    // Predicated region
    $region42: #{tpu_custom_call.1} parent=1 // pred_check
      _
    $region43: #{tpu_custom_call.1} parent=1 // pred_check_branch
      %61 = sbr.rel (0) target = $region45
    $region44: #{tpu_custom_call.1} parent=1 // pred_region
      _
    $region45: #{tpu_custom_call.1} parent=1 // pred_fallthru
      _
    // Predicated region
    $region46: #{tpu_custom_call.1} parent=1 // pred_check
      _
    $region47: #{tpu_custom_call.1} parent=1 // pred_check_branch
      %63 = sbr.rel (0) target = $region49
    $region48: #{tpu_custom_call.1} parent=1 // pred_region
      %65 = dma.done [#allocation3], 2048
    $region49: #{tpu_custom_call.1} parent=1 // pred_fallthru
      _
    // Predicated region
    $region50: #{tpu_custom_call.1} parent=1 // pred_check
      _
    $region51: #{tpu_custom_call.1} parent=1 // pred_check_branch
      %67 = sbr.rel (0) target = $region53
    $region52: #{tpu_custom_call.1} parent=1 // pred_region
      %69 = dma.done [#allocation5], 2048
    $region53: #{tpu_custom_call.1} parent=1 // pred_fallthru
      _
    %v70 = vld [vmem:[%s0] sm:$0xff]
    %v71 = vld [vmem:[%s0 + $0x8] sm:$0xff]
    %v72 = vld [vmem:[%s0 + $0x10] sm:$0xff]
    %v73 = vld [vmem:[%s0 + $0x18] sm:$0xff]
    %v74 = vld [vmem:[%s0 + $0x20] sm:$0xff]
    %v75 = vld [vmem:[%s0 + $0x28] sm:$0xff]
    %v76 = vld [vmem:[%s0 + $0x30] sm:$0xff]
    %v77 = vld [vmem:[%s0 + $0x38] sm:$0xff]
    %v78 = vld [vmem:[%s0 + $0x40] sm:$0xff]
    %v79 = vld [vmem:[%s0 + $0x48] sm:$0xff]
    %v80 = vld [vmem:[%s0 + $0x50] sm:$0xff]
    %v81 = vld [vmem:[%s0 + $0x58] sm:$0xff]
    %v82 = vld [vmem:[%s0 + $0x60] sm:$0xff]
    %v83 = vld [vmem:[%s0 + $0x68] sm:$0xff]
    %v84 = vld [vmem:[%s0 + $0x70] sm:$0xff]
    %v85 = vld [vmem:[%s0 + $0x78] sm:$0xff]
    %v86 = vld [vmem:[%s0 + $0x80] sm:$0xff]
    %v87 = vld [vmem:[%s0 + $0x88] sm:$0xff]
    %v88 = vld [vmem:[%s0 + $0x90] sm:$0xff]
    %v89 = vld [vmem:[%s0 + $0x98] sm:$0xff]
    %v90 = vld [vmem:[%s0 + $0xa0] sm:$0xff]
    %v91 = vld [vmem:[%s0 + $0xa8] sm:$0xff]
    %v92 = vld [vmem:[%s0 + $0xb0] sm:$0xff]
    %v93 = vld [vmem:[%s0 + $0xb8] sm:$0xff]
    %v94 = vld [vmem:[%s0 + $0xc0] sm:$0xff]
    %v95 = vld [vmem:[%s0 + $0xc8] sm:$0xff]
    %v96 = vld [vmem:[%s0 + $0xd0] sm:$0xff]
    %v97 = vld [vmem:[%s0 + $0xd8] sm:$0xff]
    %v98 = vld [vmem:[%s0 + $0xe0] sm:$0xff]
    %v99 = vld [vmem:[%s0 + $0xe8] sm:$0xff]
    %v100 = vld [vmem:[%s0 + $0xf0] sm:$0xff]
    %v101 = vld [vmem:[%s0 + $0xf8] sm:$0xff]
    %v102 = vld [vmem:[%s1] sm:$0xff]
    %v103 = vld [vmem:[%s1 + $0x8] sm:$0xff]
    %v104 = vld [vmem:[%s1 + $0x10] sm:$0xff]
    %v105 = vld [vmem:[%s1 + $0x18] sm:$0xff]
    %v106 = vld [vmem:[%s2] sm:$0x1]
    %v108 = vperm.slane %v106, 0
    %vm110 = vcmask 261120
    %v112 = vsel %vm110, %v70, 0
    %v115 = vsel %vm110, %v71, 0
    %v118 = vsel %vm110, %v72, 0
    %v121 = vsel %vm110, %v73, 0
    %v124 = vsel %vm110, %v74, 0
    %v127 = vsel %vm110, %v75, 0
    %v130 = vsel %vm110, %v76, 0
    %v133 = vsel %vm110, %v77, 0
    %v136 = vsel %vm110, %v78, 0
    %v139 = vsel %vm110, %v79, 0
    %v142 = vsel %vm110, %v80, 0
    %v145 = vsel %vm110, %v81, 0
    %v148 = vsel %vm110, %v82, 0
    %v151 = vsel %vm110, %v83, 0
    %v154 = vsel %vm110, %v84, 0
    %v157 = vsel %vm110, %v85, 0
    %v160 = vsel %vm110, %v86, 0
    %v163 = vsel %vm110, %v87, 0
    %v166 = vsel %vm110, %v88, 0
    %v169 = vsel %vm110, %v89, 0
    %v172 = vsel %vm110, %v90, 0
    %v175 = vsel %vm110, %v91, 0
    %v178 = vsel %vm110, %v92, 0
    %v181 = vsel %vm110, %v93, 0
    %v184 = vsel %vm110, %v94, 0
    %v187 = vsel %vm110, %v95, 0
    %v190 = vsel %vm110, %v96, 0
    %v193 = vsel %vm110, %v97, 0
    %v196 = vsel %vm110, %v98, 0
    %v199 = vsel %vm110, %v99, 0
    %v202 = vsel %vm110, %v100, 0
    %v205 = vsel %vm110, %v101, 0
    %207 = vmatpush.msra.mxu0 0.0
    %208 = vmatpush.msra.mxu0 0.0
    %209 = vmatpush.msra.mxu0 0.0
    %210 = vmatpush.msra.mxu0 0.0
    %211 = vmatpush.msra.mxu0 0.0
    %212 = vmatpush.msra.mxu0 0.0
    %213 = vmatpush.msra.mxu0 0.0
    %214 = vmatpush.msra.mxu0 0.0
    %215 = vmatpush.msra.mxu0 0.0
    %216 = vmatpush.msra.mxu0 0.0
    %217 = vmatpush.msra.mxu0 0.0
    %218 = vmatpush.msra.mxu0 0.0
    %219 = vmatpush.msra.mxu0 %v105
    %220 = vmatpush.msra.mxu0 %v104
    %221 = vmatpush.msra.mxu0 %v103
    %222 = vmatpush.msra.mxu0 %v102
    %223 = vmatmul.f32.gmra.mxu0 %v112
    %v224 = vpop.f32.mrf.mxu0
    %v225 = vadd.f32 %v108, %v224
    %226 = vmatmul.f32.gmra.mxu0 %v115
    %v227 = vpop.f32.mrf.mxu0
    %v228 = vadd.f32 %v108, %v227
    %229 = vmatmul.f32.gmra.mxu0 %v118
    %v230 = vpop.f32.mrf.mxu0
    %v231 = vadd.f32 %v108, %v230
    %232 = vmatmul.f32.gmra.mxu0 %v121
    %v233 = vpop.f32.mrf.mxu0
    %v234 = vadd.f32 %v108, %v233
    %235 = vmatmul.f32.gmra.mxu0 %v124
    %v236 = vpop.f32.mrf.mxu0
    %v237 = vadd.f32 %v108, %v236
    %238 = vmatmul.f32.gmra.mxu0 %v127
    %v239 = vpop.f32.mrf.mxu0
    %v240 = vadd.f32 %v108, %v239
    %241 = vmatmul.f32.gmra.mxu0 %v130
    %v242 = vpop.f32.mrf.mxu0
    %v243 = vadd.f32 %v108, %v242
    %244 = vmatmul.f32.gmra.mxu0 %v133
    %v245 = vpop.f32.mrf.mxu0
    %v246 = vadd.f32 %v108, %v245
    %247 = vmatmul.f32.gmra.mxu0 %v136
    %v248 = vpop.f32.mrf.mxu0
    %v249 = vadd.f32 %v108, %v248
    %250 = vmatmul.f32.gmra.mxu0 %v139
    %v251 = vpop.f32.mrf.mxu0
    %v252 = vadd.f32 %v108, %v251
    %253 = vmatmul.f32.gmra.mxu0 %v142
    %v254 = vpop.f32.mrf.mxu0
    %v255 = vadd.f32 %v108, %v254
    %256 = vmatmul.f32.gmra.mxu0 %v145
    %v257 = vpop.f32.mrf.mxu0
    %v258 = vadd.f32 %v108, %v257
    %259 = vmatmul.f32.gmra.mxu0 %v148
    %v260 = vpop.f32.mrf.mxu0
    %v261 = vadd.f32 %v108, %v260
    %262 = vmatmul.f32.gmra.mxu0 %v151
    %v263 = vpop.f32.mrf.mxu0
    %v264 = vadd.f32 %v108, %v263
    %265 = vmatmul.f32.gmra.mxu0 %v154
    %v266 = vpop.f32.mrf.mxu0
    %v267 = vadd.f32 %v108, %v266
    %268 = vmatmul.f32.gmra.mxu0 %v157
    %v269 = vpop.f32.mrf.mxu0
    %v270 = vadd.f32 %v108, %v269
    %271 = vmatmul.f32.gmra.mxu0 %v160
    %v272 = vpop.f32.mrf.mxu0
    %v273 = vadd.f32 %v108, %v272
    %274 = vmatmul.f32.gmra.mxu0 %v163
    %v275 = vpop.f32.mrf.mxu0
    %v276 = vadd.f32 %v108, %v275
    %277 = vmatmul.f32.gmra.mxu0 %v166
    %v278 = vpop.f32.mrf.mxu0
    %v279 = vadd.f32 %v108, %v278
    %280 = vmatmul.f32.gmra.mxu0 %v169
    %v281 = vpop.f32.mrf.mxu0
    %v282 = vadd.f32 %v108, %v281
    %283 = vmatmul.f32.gmra.mxu0 %v172
    %v284 = vpop.f32.mrf.mxu0
    %v285 = vadd.f32 %v108, %v284
    %286 = vmatmul.f32.gmra.mxu0 %v175
    %v287 = vpop.f32.mrf.mxu0
    %v288 = vadd.f32 %v108, %v287
    %289 = vmatmul.f32.gmra.mxu0 %v178
    %v290 = vpop.f32.mrf.mxu0
    %v291 = vadd.f32 %v108, %v290
    %292 = vmatmul.f32.gmra.mxu0 %v181
    %v293 = vpop.f32.mrf.mxu0
    %v294 = vadd.f32 %v108, %v293
    %295 = vmatmul.f32.gmra.mxu0 %v184
    %v296 = vpop.f32.mrf.mxu0
    %v297 = vadd.f32 %v108, %v296
    %298 = vmatmul.f32.gmra.mxu0 %v187
    %v299 = vpop.f32.mrf.mxu0
    %v300 = vadd.f32 %v108, %v299
    %301 = vmatmul.f32.gmra.mxu0 %v190
    %v302 = vpop.f32.mrf.mxu0
    %v303 = vadd.f32 %v108, %v302
    %304 = vmatmul.f32.gmra.mxu0 %v193
    %v305 = vpop.f32.mrf.mxu0
    %v306 = vadd.f32 %v108, %v305
    %307 = vmatmul.f32.gmra.mxu0 %v196
    %v308 = vpop.f32.mrf.mxu0
    %v309 = vadd.f32 %v108, %v308
    %310 = vmatmul.f32.gmra.mxu0 %v199
    %v311 = vpop.f32.mrf.mxu0
    %v312 = vadd.f32 %v108, %v311
    %313 = vmatmul.f32.gmra.mxu0 %v202
    %v314 = vpop.f32.mrf.mxu0
    %v315 = vadd.f32 %v108, %v314
    %316 = vmatmul.f32.gmra.mxu0 %v205
    %v317 = vpop.f32.mrf.mxu0
    %v318 = vadd.f32 %v108, %v317
    %319 = vdwg.mxu0
    %v320 = vmul.f32 %v225, 0.01
    %v321 = vmul.f32 %v228, 0.01
    %v322 = vmul.f32 %v231, 0.01
    %v323 = vmul.f32 %v234, 0.01
    %v324 = vmul.f32 %v237, 0.01
    %v325 = vmul.f32 %v240, 0.01
    %v326 = vmul.f32 %v243, 0.01
    %v327 = vmul.f32 %v246, 0.01
    %v328 = vmul.f32 %v249, 0.01
    %v329 = vmul.f32 %v252, 0.01
    %v330 = vmul.f32 %v255, 0.01
    %v331 = vmul.f32 %v258, 0.01
    %v332 = vmul.f32 %v261, 0.01
    %v333 = vmul.f32 %v264, 0.01
    %v334 = vmul.f32 %v267, 0.01
    %v335 = vmul.f32 %v270, 0.01
    %v336 = vmul.f32 %v273, 0.01
    %v337 = vmul.f32 %v276, 0.01
    %v338 = vmul.f32 %v279, 0.01
    %v339 = vmul.f32 %v282, 0.01
    %v340 = vmul.f32 %v285, 0.01
    %v341 = vmul.f32 %v288, 0.01
    %v342 = vmul.f32 %v291, 0.01
    %v343 = vmul.f32 %v294, 0.01
    %v344 = vmul.f32 %v297, 0.01
    %v345 = vmul.f32 %v300, 0.01
    %v346 = vmul.f32 %v303, 0.01
    %v347 = vmul.f32 %v306, 0.01
    %v348 = vmul.f32 %v309, 0.01
    %v349 = vmul.f32 %v312, 0.01
    %v350 = vmul.f32 %v315, 0.01
    %v351 = vmul.f32 %v318, 0.01
    %v352 = vmax.f32 %v225, %v320
    %v353 = vmax.f32 %v228, %v321
    %v354 = vmax.f32 %v231, %v322
    %v355 = vmax.f32 %v234, %v323
    %v356 = vmax.f32 %v237, %v324
    %v357 = vmax.f32 %v240, %v325
    %v358 = vmax.f32 %v243, %v326
    %v359 = vmax.f32 %v246, %v327
    %v360 = vmax.f32 %v249, %v328
    %v361 = vmax.f32 %v252, %v329
    %v362 = vmax.f32 %v255, %v330
    %v363 = vmax.f32 %v258, %v331
    %v364 = vmax.f32 %v261, %v332
    %v365 = vmax.f32 %v264, %v333
    %v366 = vmax.f32 %v267, %v334
    %v367 = vmax.f32 %v270, %v335
    %v368 = vmax.f32 %v273, %v336
    %v369 = vmax.f32 %v276, %v337
    %v370 = vmax.f32 %v279, %v338
    %v371 = vmax.f32 %v282, %v339
    %v372 = vmax.f32 %v285, %v340
    %v373 = vmax.f32 %v288, %v341
    %v374 = vmax.f32 %v291, %v342
    %v375 = vmax.f32 %v294, %v343
    %v376 = vmax.f32 %v297, %v344
    %v377 = vmax.f32 %v300, %v345
    %v378 = vmax.f32 %v303, %v346
    %v379 = vmax.f32 %v306, %v347
    %v380 = vmax.f32 %v309, %v348
    %v381 = vmax.f32 %v312, %v349
    %v382 = vmax.f32 %v315, %v350
    %v383 = vmax.f32 %v318, %v351
    %v384 = vld [vmem:[%s3] sm:$0xff]
    %v385 = vld [vmem:[%s3 + $0x8] sm:$0xff]
    %v386 = vld [vmem:[%s3 + $0x10] sm:$0xff]
    %v387 = vld [vmem:[%s3 + $0x18] sm:$0xff]
    %v388 = vld [vmem:[%s3 + $0x20] sm:$0xff]
    %v389 = vld [vmem:[%s3 + $0x28] sm:$0xff]
    %v390 = vld [vmem:[%s3 + $0x30] sm:$0xff]
    %v391 = vld [vmem:[%s3 + $0x38] sm:$0xff]
    %v392 = vld [vmem:[%s3 + $0x40] sm:$0xff]
    %v393 = vld [vmem:[%s3 + $0x48] sm:$0xff]
    %v394 = vld [vmem:[%s3 + $0x50] sm:$0xff]
    %v395 = vld [vmem:[%s3 + $0x58] sm:$0xff]
    %v396 = vld [vmem:[%s3 + $0x60] sm:$0xff]
    %v397 = vld [vmem:[%s3 + $0x68] sm:$0xff]
    %v398 = vld [vmem:[%s3 + $0x70] sm:$0xff]
    %v399 = vld [vmem:[%s3 + $0x78] sm:$0xff]
    %v400 = vld [vmem:[%s4] sm:$0x1]
    %v402 = vperm.slane %v400, 0
    %404 = vmatpush.msra.mxu0 %v399
    %405 = vmatpush.msra.mxu0 %v398
    %406 = vmatpush.msra.mxu0 %v397
    %407 = vmatpush.msra.mxu0 %v396
    %408 = vmatpush.msra.mxu0 %v395
    %409 = vmatpush.msra.mxu0 %v394
    %410 = vmatpush.msra.mxu0 %v393
    %411 = vmatpush.msra.mxu0 %v392
    %412 = vmatpush.msra.mxu0 %v391
    %413 = vmatpush.msra.mxu0 %v390
    %414 = vmatpush.msra.mxu0 %v389
    %415 = vmatpush.msra.mxu0 %v388
    %416 = vmatpush.msra.mxu0 %v387
    %417 = vmatpush.msra.mxu0 %v386
    %418 = vmatpush.msra.mxu0 %v385
    %419 = vmatpush.msra.mxu0 %v384
    %420 = vmatmul.f32.gmra.mxu0 %v352
    %v421 = vpop.f32.mrf.mxu0
    %v422 = vadd.f32 %v402, %v421
    %423 = vmatmul.f32.gmra.mxu0 %v353
    %v424 = vpop.f32.mrf.mxu0
    %v425 = vadd.f32 %v402, %v424
    %426 = vmatmul.f32.gmra.mxu0 %v354
    %v427 = vpop.f32.mrf.mxu0
    %v428 = vadd.f32 %v402, %v427
    %429 = vmatmul.f32.gmra.mxu0 %v355
    %v430 = vpop.f32.mrf.mxu0
    %v431 = vadd.f32 %v402, %v430
    %432 = vmatmul.f32.gmra.mxu0 %v356
    %v433 = vpop.f32.mrf.mxu0
    %v434 = vadd.f32 %v402, %v433
    %435 = vmatmul.f32.gmra.mxu0 %v357
    %v436 = vpop.f32.mrf.mxu0
    %v437 = vadd.f32 %v402, %v436
    %438 = vmatmul.f32.gmra.mxu0 %v358
    %v439 = vpop.f32.mrf.mxu0
    %v440 = vadd.f32 %v402, %v439
    %441 = vmatmul.f32.gmra.mxu0 %v359
    %v442 = vpop.f32.mrf.mxu0
    %v443 = vadd.f32 %v402, %v442
    %444 = vmatmul.f32.gmra.mxu0 %v360
    %v445 = vpop.f32.mrf.mxu0
    %v446 = vadd.f32 %v402, %v445
    %447 = vmatmul.f32.gmra.mxu0 %v361
    %v448 = vpop.f32.mrf.mxu0
    %v449 = vadd.f32 %v402, %v448
    %450 = vmatmul.f32.gmra.mxu0 %v362
    %v451 = vpop.f32.mrf.mxu0
    %v452 = vadd.f32 %v402, %v451
    %453 = vmatmul.f32.gmra.mxu0 %v363
    %v454 = vpop.f32.mrf.mxu0
    %v455 = vadd.f32 %v402, %v454
    %456 = vmatmul.f32.gmra.mxu0 %v364
    %v457 = vpop.f32.mrf.mxu0
    %v458 = vadd.f32 %v402, %v457
    %459 = vmatmul.f32.gmra.mxu0 %v365
    %v460 = vpop.f32.mrf.mxu0
    %v461 = vadd.f32 %v402, %v460
    %462 = vmatmul.f32.gmra.mxu0 %v366
    %v463 = vpop.f32.mrf.mxu0
    %v464 = vadd.f32 %v402, %v463
    %465 = vmatmul.f32.gmra.mxu0 %v367
    %v466 = vpop.f32.mrf.mxu0
    %v467 = vadd.f32 %v402, %v466
    %468 = vmatmul.f32.gmra.mxu0 %v368
    %v469 = vpop.f32.mrf.mxu0
    %v470 = vadd.f32 %v402, %v469
    %471 = vmatmul.f32.gmra.mxu0 %v369
    %v472 = vpop.f32.mrf.mxu0
    %v473 = vadd.f32 %v402, %v472
    %474 = vmatmul.f32.gmra.mxu0 %v370
    %v475 = vpop.f32.mrf.mxu0
    %v476 = vadd.f32 %v402, %v475
    %477 = vmatmul.f32.gmra.mxu0 %v371
    %v478 = vpop.f32.mrf.mxu0
    %v479 = vadd.f32 %v402, %v478
    %480 = vmatmul.f32.gmra.mxu0 %v372
    %v481 = vpop.f32.mrf.mxu0
    %v482 = vadd.f32 %v402, %v481
    %483 = vmatmul.f32.gmra.mxu0 %v373
    %v484 = vpop.f32.mrf.mxu0
    %v485 = vadd.f32 %v402, %v484
    %486 = vmatmul.f32.gmra.mxu0 %v374
    %v487 = vpop.f32.mrf.mxu0
    %v488 = vadd.f32 %v402, %v487
    %489 = vmatmul.f32.gmra.mxu0 %v375
    %v490 = vpop.f32.mrf.mxu0
    %v491 = vadd.f32 %v402, %v490
    %492 = vmatmul.f32.gmra.mxu0 %v376
    %v493 = vpop.f32.mrf.mxu0
    %v494 = vadd.f32 %v402, %v493
    %495 = vmatmul.f32.gmra.mxu0 %v377
    %v496 = vpop.f32.mrf.mxu0
    %v497 = vadd.f32 %v402, %v496
    %498 = vmatmul.f32.gmra.mxu0 %v378
    %v499 = vpop.f32.mrf.mxu0
    %v500 = vadd.f32 %v402, %v499
    %501 = vmatmul.f32.gmra.mxu0 %v379
    %v502 = vpop.f32.mrf.mxu0
    %v503 = vadd.f32 %v402, %v502
    %504 = vmatmul.f32.gmra.mxu0 %v380
    %v505 = vpop.f32.mrf.mxu0
    %v506 = vadd.f32 %v402, %v505
    %507 = vmatmul.f32.gmra.mxu0 %v381
    %v508 = vpop.f32.mrf.mxu0
    %v509 = vadd.f32 %v402, %v508
    %510 = vmatmul.f32.gmra.mxu0 %v382
    %v511 = vpop.f32.mrf.mxu0
    %v512 = vadd.f32 %v402, %v511
    %513 = vmatmul.f32.gmra.mxu0 %v383
    %v514 = vpop.f32.mrf.mxu0
    %v515 = vadd.f32 %v402, %v514
    %516 = vdwg.mxu0
    %v517 = vmul.f32 %v422, 0.01
    %v518 = vmul.f32 %v425, 0.01
    %v519 = vmul.f32 %v428, 0.01
    %v520 = vmul.f32 %v431, 0.01
    %v521 = vmul.f32 %v434, 0.01
    %v522 = vmul.f32 %v437, 0.01
    %v523 = vmul.f32 %v440, 0.01
    %v524 = vmul.f32 %v443, 0.01
    %v525 = vmul.f32 %v446, 0.01
    %v526 = vmul.f32 %v449, 0.01
    %v527 = vmul.f32 %v452, 0.01
    %v528 = vmul.f32 %v455, 0.01
    %v529 = vmul.f32 %v458, 0.01
    %v530 = vmul.f32 %v461, 0.01
    %v531 = vmul.f32 %v464, 0.01
    %v532 = vmul.f32 %v467, 0.01
    %v533 = vmul.f32 %v470, 0.01
    %v534 = vmul.f32 %v473, 0.01
    %v535 = vmul.f32 %v476, 0.01
    %v536 = vmul.f32 %v479, 0.01
    %v537 = vmul.f32 %v482, 0.01
    %v538 = vmul.f32 %v485, 0.01
    %v539 = vmul.f32 %v488, 0.01
    %v540 = vmul.f32 %v491, 0.01
    %v541 = vmul.f32 %v494, 0.01
    %v542 = vmul.f32 %v497, 0.01
    %v543 = vmul.f32 %v500, 0.01
    %v544 = vmul.f32 %v503, 0.01
    %v545 = vmul.f32 %v506, 0.01
    %v546 = vmul.f32 %v509, 0.01
    %v547 = vmul.f32 %v512, 0.01
    %v548 = vmul.f32 %v515, 0.01
    %v549 = vmax.f32 %v422, %v517
    %v550 = vmax.f32 %v425, %v518
    %v551 = vmax.f32 %v428, %v519
    %v552 = vmax.f32 %v431, %v520
    %v553 = vmax.f32 %v434, %v521
    %v554 = vmax.f32 %v437, %v522
    %v555 = vmax.f32 %v440, %v523
    %v556 = vmax.f32 %v443, %v524
    %v557 = vmax.f32 %v446, %v525
    %v558 = vmax.f32 %v449, %v526
    %v559 = vmax.f32 %v452, %v527
    %v560 = vmax.f32 %v455, %v528
    %v561 = vmax.f32 %v458, %v529
    %v562 = vmax.f32 %v461, %v530
    %v563 = vmax.f32 %v464, %v531
    %v564 = vmax.f32 %v467, %v532
    %v565 = vmax.f32 %v470, %v533
    %v566 = vmax.f32 %v473, %v534
    %v567 = vmax.f32 %v476, %v535
    %v568 = vmax.f32 %v479, %v536
    %v569 = vmax.f32 %v482, %v537
    %v570 = vmax.f32 %v485, %v538
    %v571 = vmax.f32 %v488, %v539
    %v572 = vmax.f32 %v491, %v540
    %v573 = vmax.f32 %v494, %v541
    %v574 = vmax.f32 %v497, %v542
    %v575 = vmax.f32 %v500, %v543
    %v576 = vmax.f32 %v503, %v544
    %v577 = vmax.f32 %v506, %v545
    %v578 = vmax.f32 %v509, %v546
    %v579 = vmax.f32 %v512, %v547
    %v580 = vmax.f32 %v515, %v548
    %v581 = vld [vmem:[%s5] sm:$0xff]
    %v582 = vld [vmem:[%s5 + $0x8] sm:$0xff]
    %v583 = vld [vmem:[%s5 + $0x10] sm:$0xff]
    %v584 = vld [vmem:[%s5 + $0x18] sm:$0xff]
    %v585 = vld [vmem:[%s5 + $0x20] sm:$0xff]
    %v586 = vld [vmem:[%s5 + $0x28] sm:$0xff]
    %v587 = vld [vmem:[%s5 + $0x30] sm:$0xff]
    %v588 = vld [vmem:[%s5 + $0x38] sm:$0xff]
    %v589 = vld [vmem:[%s5 + $0x40] sm:$0xff]
    %v590 = vld [vmem:[%s5 + $0x48] sm:$0xff]
    %v591 = vld [vmem:[%s5 + $0x50] sm:$0xff]
    %v592 = vld [vmem:[%s5 + $0x58] sm:$0xff]
    %v593 = vld [vmem:[%s5 + $0x60] sm:$0xff]
    %v594 = vld [vmem:[%s5 + $0x68] sm:$0xff]
    %v595 = vld [vmem:[%s5 + $0x70] sm:$0xff]
    %v596 = vld [vmem:[%s5 + $0x78] sm:$0xff]
    %v597 = vld [vmem:[%s6] sm:$0x1]
    %v599 = vperm.slane %v597, 0
    %601 = vmatpush.msra.mxu0 %v596
    %602 = vmatpush.msra.mxu0 %v595
    %603 = vmatpush.msra.mxu0 %v594
    %604 = vmatpush.msra.mxu0 %v593
    %605 = vmatpush.msra.mxu0 %v592
    %606 = vmatpush.msra.mxu0 %v591
    %607 = vmatpush.msra.mxu0 %v590
    %608 = vmatpush.msra.mxu0 %v589
    %609 = vmatpush.msra.mxu0 %v588
    %610 = vmatpush.msra.mxu0 %v587
    %611 = vmatpush.msra.mxu0 %v586
    %612 = vmatpush.msra.mxu0 %v585
    %613 = vmatpush.msra.mxu0 %v584
    %614 = vmatpush.msra.mxu0 %v583
    %615 = vmatpush.msra.mxu0 %v582
    %616 = vmatpush.msra.mxu0 %v581
    %617 = vmatmul.f32.gmra.mxu0 %v549
    %v618 = vpop.f32.mrf.mxu0
    %v619 = vadd.f32 %v599, %v618
    %620 = vmatmul.f32.gmra.mxu0 %v550
    %v621 = vpop.f32.mrf.mxu0
    %v622 = vadd.f32 %v599, %v621
    %623 = vmatmul.f32.gmra.mxu0 %v551
    %v624 = vpop.f32.mrf.mxu0
    %v625 = vadd.f32 %v599, %v624
    %626 = vmatmul.f32.gmra.mxu0 %v552
    %v627 = vpop.f32.mrf.mxu0
    %v628 = vadd.f32 %v599, %v627
    %629 = vmatmul.f32.gmra.mxu0 %v553
    %v630 = vpop.f32.mrf.mxu0
    %v631 = vadd.f32 %v599, %v630
    %632 = vmatmul.f32.gmra.mxu0 %v554
    %v633 = vpop.f32.mrf.mxu0
    %v634 = vadd.f32 %v599, %v633
    %635 = vmatmul.f32.gmra.mxu0 %v555
    %v636 = vpop.f32.mrf.mxu0
    %v637 = vadd.f32 %v599, %v636
    %638 = vmatmul.f32.gmra.mxu0 %v556
    %v639 = vpop.f32.mrf.mxu0
    %v640 = vadd.f32 %v599, %v639
    %641 = vmatmul.f32.gmra.mxu0 %v557
    %v642 = vpop.f32.mrf.mxu0
    %v643 = vadd.f32 %v599, %v642
    %644 = vmatmul.f32.gmra.mxu0 %v558
    %v645 = vpop.f32.mrf.mxu0
    %v646 = vadd.f32 %v599, %v645
    %647 = vmatmul.f32.gmra.mxu0 %v559
    %v648 = vpop.f32.mrf.mxu0
    %v649 = vadd.f32 %v599, %v648
    %650 = vmatmul.f32.gmra.mxu0 %v560
    %v651 = vpop.f32.mrf.mxu0
    %v652 = vadd.f32 %v599, %v651
    %653 = vmatmul.f32.gmra.mxu0 %v561
    %v654 = vpop.f32.mrf.mxu0
    %v655 = vadd.f32 %v599, %v654
    %656 = vmatmul.f32.gmra.mxu0 %v562
    %v657 = vpop.f32.mrf.mxu0
    %v658 = vadd.f32 %v599, %v657
    %659 = vmatmul.f32.gmra.mxu0 %v563
    %v660 = vpop.f32.mrf.mxu0
    %v661 = vadd.f32 %v599, %v660
    %662 = vmatmul.f32.gmra.mxu0 %v564
    %v663 = vpop.f32.mrf.mxu0
    %v664 = vadd.f32 %v599, %v663
    %665 = vmatmul.f32.gmra.mxu0 %v565
    %v666 = vpop.f32.mrf.mxu0
    %v667 = vadd.f32 %v599, %v666
    %668 = vmatmul.f32.gmra.mxu0 %v566
    %v669 = vpop.f32.mrf.mxu0
    %v670 = vadd.f32 %v599, %v669
    %671 = vmatmul.f32.gmra.mxu0 %v567
    %v672 = vpop.f32.mrf.mxu0
    %v673 = vadd.f32 %v599, %v672
    %674 = vmatmul.f32.gmra.mxu0 %v568
    %v675 = vpop.f32.mrf.mxu0
    %v676 = vadd.f32 %v599, %v675
    %677 = vmatmul.f32.gmra.mxu0 %v569
    %v678 = vpop.f32.mrf.mxu0
    %v679 = vadd.f32 %v599, %v678
    %680 = vmatmul.f32.gmra.mxu0 %v570
    %v681 = vpop.f32.mrf.mxu0
    %v682 = vadd.f32 %v599, %v681
    %683 = vmatmul.f32.gmra.mxu0 %v571
    %v684 = vpop.f32.mrf.mxu0
    %v685 = vadd.f32 %v599, %v684
    %686 = vmatmul.f32.gmra.mxu0 %v572
    %v687 = vpop.f32.mrf.mxu0
    %v688 = vadd.f32 %v599, %v687
    %689 = vmatmul.f32.gmra.mxu0 %v573
    %v690 = vpop.f32.mrf.mxu0
    %v691 = vadd.f32 %v599, %v690
    %692 = vmatmul.f32.gmra.mxu0 %v574
    %v693 = vpop.f32.mrf.mxu0
    %v694 = vadd.f32 %v599, %v693
    %695 = vmatmul.f32.gmra.mxu0 %v575
    %v696 = vpop.f32.mrf.mxu0
    %v697 = vadd.f32 %v599, %v696
    %698 = vmatmul.f32.gmra.mxu0 %v576
    %v699 = vpop.f32.mrf.mxu0
    %v700 = vadd.f32 %v599, %v699
    %701 = vmatmul.f32.gmra.mxu0 %v577
    %v702 = vpop.f32.mrf.mxu0
    %v703 = vadd.f32 %v599, %v702
    %704 = vmatmul.f32.gmra.mxu0 %v578
    %v705 = vpop.f32.mrf.mxu0
    %v706 = vadd.f32 %v599, %v705
    %707 = vmatmul.f32.gmra.mxu0 %v579
    %v708 = vpop.f32.mrf.mxu0
    %v709 = vadd.f32 %v599, %v708
    %710 = vmatmul.f32.gmra.mxu0 %v580
    %v711 = vpop.f32.mrf.mxu0
    %v712 = vadd.f32 %v599, %v711
    %713 = vdwg.mxu0
    %v714 = vmul.f32 %v619, 0.01
    %v715 = vmul.f32 %v622, 0.01
    %v716 = vmul.f32 %v625, 0.01
    %v717 = vmul.f32 %v628, 0.01
    %v718 = vmul.f32 %v631, 0.01
    %v719 = vmul.f32 %v634, 0.01
    %v720 = vmul.f32 %v637, 0.01
    %v721 = vmul.f32 %v640, 0.01
    %v722 = vmul.f32 %v643, 0.01
    %v723 = vmul.f32 %v646, 0.01
    %v724 = vmul.f32 %v649, 0.01
    %v725 = vmul.f32 %v652, 0.01
    %v726 = vmul.f32 %v655, 0.01
    %v727 = vmul.f32 %v658, 0.01
    %v728 = vmul.f32 %v661, 0.01
    %v729 = vmul.f32 %v664, 0.01
    %v730 = vmul.f32 %v667, 0.01
    %v731 = vmul.f32 %v670, 0.01
    %v732 = vmul.f32 %v673, 0.01
    %v733 = vmul.f32 %v676, 0.01
    %v734 = vmul.f32 %v679, 0.01
    %v735 = vmul.f32 %v682, 0.01
    %v736 = vmul.f32 %v685, 0.01
    %v737 = vmul.f32 %v688, 0.01
    %v738 = vmul.f32 %v691, 0.01
    %v739 = vmul.f32 %v694, 0.01
    %v740 = vmul.f32 %v697, 0.01
    %v741 = vmul.f32 %v700, 0.01
    %v742 = vmul.f32 %v703, 0.01
    %v743 = vmul.f32 %v706, 0.01
    %v744 = vmul.f32 %v709, 0.01
    %v745 = vmul.f32 %v712, 0.01
    %v746 = vmax.f32 %v619, %v714
    %v747 = vmax.f32 %v622, %v715
    %v748 = vmax.f32 %v625, %v716
    %v749 = vmax.f32 %v628, %v717
    %v750 = vmax.f32 %v631, %v718
    %v751 = vmax.f32 %v634, %v719
    %v752 = vmax.f32 %v637, %v720
    %v753 = vmax.f32 %v640, %v721
    %v754 = vmax.f32 %v643, %v722
    %v755 = vmax.f32 %v646, %v723
    %v756 = vmax.f32 %v649, %v724
    %v757 = vmax.f32 %v652, %v725
    %v758 = vmax.f32 %v655, %v726
    %v759 = vmax.f32 %v658, %v727
    %v760 = vmax.f32 %v661, %v728
    %v761 = vmax.f32 %v664, %v729
    %v762 = vmax.f32 %v667, %v730
    %v763 = vmax.f32 %v670, %v731
    %v764 = vmax.f32 %v673, %v732
    %v765 = vmax.f32 %v676, %v733
    %v766 = vmax.f32 %v679, %v734
    %v767 = vmax.f32 %v682, %v735
    %v768 = vmax.f32 %v685, %v736
    %v769 = vmax.f32 %v688, %v737
    %v770 = vmax.f32 %v691, %v738
    %v771 = vmax.f32 %v694, %v739
    %v772 = vmax.f32 %v697, %v740
    %v773 = vmax.f32 %v700, %v741
    %v774 = vmax.f32 %v703, %v742
    %v775 = vmax.f32 %v706, %v743
    %v776 = vmax.f32 %v709, %v744
    %v777 = vmax.f32 %v712, %v745
    %v778 = vld [vmem:[#allocation2] sm:$0xff]
    %v779 = vld [vmem:[#allocation2 + $0x8] sm:$0xff]
    %v780 = vld [vmem:[#allocation2 + $0x10] sm:$0xff]
    %v781 = vld [vmem:[#allocation2 + $0x18] sm:$0xff]
    %v782 = vld [vmem:[#allocation2 + $0x20] sm:$0xff]
    %v783 = vld [vmem:[#allocation2 + $0x28] sm:$0xff]
    %v784 = vld [vmem:[#allocation2 + $0x30] sm:$0xff]
    %v785 = vld [vmem:[#allocation2 + $0x38] sm:$0xff]
    %v786 = vld [vmem:[#allocation2 + $0x40] sm:$0xff]
    %v787 = vld [vmem:[#allocation2 + $0x48] sm:$0xff]
    %v788 = vld [vmem:[#allocation2 + $0x50] sm:$0xff]
    %v789 = vld [vmem:[#allocation2 + $0x58] sm:$0xff]
    %v790 = vld [vmem:[#allocation2 + $0x60] sm:$0xff]
    %v791 = vld [vmem:[#allocation2 + $0x68] sm:$0xff]
    %v792 = vld [vmem:[#allocation2 + $0x70] sm:$0xff]
    %v793 = vld [vmem:[#allocation2 + $0x78] sm:$0xff]
    %v794 = vld [vmem:[%s8] sm:$0x1]
    %v796 = vperm.slane %v794, 0
    %798 = vmatpush.msra.mxu0 %v793
    %799 = vmatpush.msra.mxu0 %v792
    %800 = vmatpush.msra.mxu0 %v791
    %801 = vmatpush.msra.mxu0 %v790
    %802 = vmatpush.msra.mxu0 %v789
    %803 = vmatpush.msra.mxu0 %v788
    %804 = vmatpush.msra.mxu0 %v787
    %805 = vmatpush.msra.mxu0 %v786
    %806 = vmatpush.msra.mxu0 %v785
    %807 = vmatpush.msra.mxu0 %v784
    %808 = vmatpush.msra.mxu0 %v783
    %809 = vmatpush.msra.mxu0 %v782
    %810 = vmatpush.msra.mxu0 %v781
    %811 = vmatpush.msra.mxu0 %v780
    %812 = vmatpush.msra.mxu0 %v779
    %813 = vmatpush.msra.mxu0 %v778
    %814 = vmatmul.f32.gmra.mxu0 %v746
    %v815 = vpop.f32.mrf.mxu0
    %v816 = vadd.f32 %v796, %v815
    %817 = vmatmul.f32.gmra.mxu0 %v747
    %v818 = vpop.f32.mrf.mxu0
    %v819 = vadd.f32 %v796, %v818
    %820 = vmatmul.f32.gmra.mxu0 %v748
    %v821 = vpop.f32.mrf.mxu0
    %v822 = vadd.f32 %v796, %v821
    %823 = vmatmul.f32.gmra.mxu0 %v749
    %v824 = vpop.f32.mrf.mxu0
    %v825 = vadd.f32 %v796, %v824
    %826 = vmatmul.f32.gmra.mxu0 %v750
    %v827 = vpop.f32.mrf.mxu0
    %v828 = vadd.f32 %v796, %v827
    %829 = vmatmul.f32.gmra.mxu0 %v751
    %v830 = vpop.f32.mrf.mxu0
    %v831 = vadd.f32 %v796, %v830
    %832 = vmatmul.f32.gmra.mxu0 %v752
    %v833 = vpop.f32.mrf.mxu0
    %v834 = vadd.f32 %v796, %v833
    %835 = vmatmul.f32.gmra.mxu0 %v753
    %v836 = vpop.f32.mrf.mxu0
    %v837 = vadd.f32 %v796, %v836
    %838 = vmatmul.f32.gmra.mxu0 %v754
    %v839 = vpop.f32.mrf.mxu0
    %v840 = vadd.f32 %v796, %v839
    %841 = vmatmul.f32.gmra.mxu0 %v755
    %v842 = vpop.f32.mrf.mxu0
    %v843 = vadd.f32 %v796, %v842
    %844 = vmatmul.f32.gmra.mxu0 %v756
    %v845 = vpop.f32.mrf.mxu0
    %v846 = vadd.f32 %v796, %v845
    %847 = vmatmul.f32.gmra.mxu0 %v757
    %v848 = vpop.f32.mrf.mxu0
    %v849 = vadd.f32 %v796, %v848
    %850 = vmatmul.f32.gmra.mxu0 %v758
    %v851 = vpop.f32.mrf.mxu0
    %v852 = vadd.f32 %v796, %v851
    %853 = vmatmul.f32.gmra.mxu0 %v759
    %v854 = vpop.f32.mrf.mxu0
    %v855 = vadd.f32 %v796, %v854
    %856 = vmatmul.f32.gmra.mxu0 %v760
    %v857 = vpop.f32.mrf.mxu0
    %v858 = vadd.f32 %v796, %v857
    %859 = vmatmul.f32.gmra.mxu0 %v761
    %v860 = vpop.f32.mrf.mxu0
    %v861 = vadd.f32 %v796, %v860
    %862 = vmatmul.f32.gmra.mxu0 %v762
    %v863 = vpop.f32.mrf.mxu0
    %v864 = vadd.f32 %v796, %v863
    %865 = vmatmul.f32.gmra.mxu0 %v763
    %v866 = vpop.f32.mrf.mxu0
    %v867 = vadd.f32 %v796, %v866
    %868 = vmatmul.f32.gmra.mxu0 %v764
    %v869 = vpop.f32.mrf.mxu0
    %v870 = vadd.f32 %v796, %v869
    %871 = vmatmul.f32.gmra.mxu0 %v765
    %v872 = vpop.f32.mrf.mxu0
    %v873 = vadd.f32 %v796, %v872
    %874 = vmatmul.f32.gmra.mxu0 %v766
    %v875 = vpop.f32.mrf.mxu0
    %v876 = vadd.f32 %v796, %v875
    %877 = vmatmul.f32.gmra.mxu0 %v767
    %v878 = vpop.f32.mrf.mxu0
    %v879 = vadd.f32 %v796, %v878
    %880 = vmatmul.f32.gmra.mxu0 %v768
    %v881 = vpop.f32.mrf.mxu0
    %v882 = vadd.f32 %v796, %v881
    %883 = vmatmul.f32.gmra.mxu0 %v769
    %v884 = vpop.f32.mrf.mxu0
    %v885 = vadd.f32 %v796, %v884
    %886 = vmatmul.f32.gmra.mxu0 %v770
    %v887 = vpop.f32.mrf.mxu0
    %v888 = vadd.f32 %v796, %v887
    %889 = vmatmul.f32.gmra.mxu0 %v771
    %v890 = vpop.f32.mrf.mxu0
    %v891 = vadd.f32 %v796, %v890
    %892 = vmatmul.f32.gmra.mxu0 %v772
    %v893 = vpop.f32.mrf.mxu0
    %v894 = vadd.f32 %v796, %v893
    %895 = vmatmul.f32.gmra.mxu0 %v773
    %v896 = vpop.f32.mrf.mxu0
    %v897 = vadd.f32 %v796, %v896
    %898 = vmatmul.f32.gmra.mxu0 %v774
    %v899 = vpop.f32.mrf.mxu0
    %v900 = vadd.f32 %v796, %v899
    %901 = vmatmul.f32.gmra.mxu0 %v775
    %v902 = vpop.f32.mrf.mxu0
    %v903 = vadd.f32 %v796, %v902
    %904 = vmatmul.f32.gmra.mxu0 %v776
    %v905 = vpop.f32.mrf.mxu0
    %v906 = vadd.f32 %v796, %v905
    %907 = vmatmul.f32.gmra.mxu0 %v777
    %v908 = vpop.f32.mrf.mxu0
    %v909 = vadd.f32 %v796, %v908
    %910 = vdwg.mxu0
    %v911 = vmul.f32 %v816, 0.01
    %v912 = vmul.f32 %v819, 0.01
    %v913 = vmul.f32 %v822, 0.01
    %v914 = vmul.f32 %v825, 0.01
    %v915 = vmul.f32 %v828, 0.01
    %v916 = vmul.f32 %v831, 0.01
    %v917 = vmul.f32 %v834, 0.01
    %v918 = vmul.f32 %v837, 0.01
    %v919 = vmul.f32 %v840, 0.01
    %v920 = vmul.f32 %v843, 0.01
    %v921 = vmul.f32 %v846, 0.01
    %v922 = vmul.f32 %v849, 0.01
    %v923 = vmul.f32 %v852, 0.01
    %v924 = vmul.f32 %v855, 0.01
    %v925 = vmul.f32 %v858, 0.01
    %v926 = vmul.f32 %v861, 0.01
    %v927 = vmul.f32 %v864, 0.01
    %v928 = vmul.f32 %v867, 0.01
    %v929 = vmul.f32 %v870, 0.01
    %v930 = vmul.f32 %v873, 0.01
    %v931 = vmul.f32 %v876, 0.01
    %v932 = vmul.f32 %v879, 0.01
    %v933 = vmul.f32 %v882, 0.01
    %v934 = vmul.f32 %v885, 0.01
    %v935 = vmul.f32 %v888, 0.01
    %v936 = vmul.f32 %v891, 0.01
    %v937 = vmul.f32 %v894, 0.01
    %v938 = vmul.f32 %v897, 0.01
    %v939 = vmul.f32 %v900, 0.01
    %v940 = vmul.f32 %v903, 0.01
    %v941 = vmul.f32 %v906, 0.01
    %v942 = vmul.f32 %v909, 0.01
    %v943 = vmax.f32 %v816, %v911
    %v944 = vmax.f32 %v819, %v912
    %v945 = vmax.f32 %v822, %v913
    %v946 = vmax.f32 %v825, %v914
    %v947 = vmax.f32 %v828, %v915
    %v948 = vmax.f32 %v831, %v916
    %v949 = vmax.f32 %v834, %v917
    %v950 = vmax.f32 %v837, %v918
    %v951 = vmax.f32 %v840, %v919
    %v952 = vmax.f32 %v843, %v920
    %v953 = vmax.f32 %v846, %v921
    %v954 = vmax.f32 %v849, %v922
    %v955 = vmax.f32 %v852, %v923
    %v956 = vmax.f32 %v855, %v924
    %v957 = vmax.f32 %v858, %v925
    %v958 = vmax.f32 %v861, %v926
    %v959 = vmax.f32 %v864, %v927
    %v960 = vmax.f32 %v867, %v928
    %v961 = vmax.f32 %v870, %v929
    %v962 = vmax.f32 %v873, %v930
    %v963 = vmax.f32 %v876, %v931
    %v964 = vmax.f32 %v879, %v932
    %v965 = vmax.f32 %v882, %v933
    %v966 = vmax.f32 %v885, %v934
    %v967 = vmax.f32 %v888, %v935
    %v968 = vmax.f32 %v891, %v936
    %v969 = vmax.f32 %v894, %v937
    %v970 = vmax.f32 %v897, %v938
    %v971 = vmax.f32 %v900, %v939
    %v972 = vmax.f32 %v903, %v940
    %v973 = vmax.f32 %v906, %v941
    %v974 = vmax.f32 %v909, %v942
    %v975 = vld [vmem:[#allocation4] sm:$0xff]
    %v976 = vld [vmem:[#allocation4 + $0x8] sm:$0xff]
    %v977 = vld [vmem:[#allocation4 + $0x10] sm:$0xff]
    %v978 = vld [vmem:[#allocation4 + $0x18] sm:$0xff]
    %v979 = vld [vmem:[#allocation4 + $0x20] sm:$0xff]
    %v980 = vld [vmem:[#allocation4 + $0x28] sm:$0xff]
    %v981 = vld [vmem:[#allocation4 + $0x30] sm:$0xff]
    %v982 = vld [vmem:[#allocation4 + $0x38] sm:$0xff]
    %v983 = vld [vmem:[#allocation4 + $0x40] sm:$0xff]
    %v984 = vld [vmem:[#allocation4 + $0x48] sm:$0xff]
    %v985 = vld [vmem:[#allocation4 + $0x50] sm:$0xff]
    %v986 = vld [vmem:[#allocation4 + $0x58] sm:$0xff]
    %v987 = vld [vmem:[#allocation4 + $0x60] sm:$0xff]
    %v988 = vld [vmem:[#allocation4 + $0x68] sm:$0xff]
    %v989 = vld [vmem:[#allocation4 + $0x70] sm:$0xff]
    %v990 = vld [vmem:[#allocation4 + $0x78] sm:$0xff]
    %v991 = vld [vmem:[%s10] sm:$0x1]
    %v993 = vperm.slane %v991, 0
    %995 = vmatpush.msra.mxu0 %v990
    %996 = vmatpush.msra.mxu0 %v989
    %997 = vmatpush.msra.mxu0 %v988
    %998 = vmatpush.msra.mxu0 %v987
    %999 = vmatpush.msra.mxu0 %v986
    %1000 = vmatpush.msra.mxu0 %v985
    %1001 = vmatpush.msra.mxu0 %v984
    %1002 = vmatpush.msra.mxu0 %v983
    %1003 = vmatpush.msra.mxu0 %v982
    %1004 = vmatpush.msra.mxu0 %v981
    %1005 = vmatpush.msra.mxu0 %v980
    %1006 = vmatpush.msra.mxu0 %v979
    %1007 = vmatpush.msra.mxu0 %v978
    %1008 = vmatpush.msra.mxu0 %v977
    %1009 = vmatpush.msra.mxu0 %v976
    %1010 = vmatpush.msra.mxu0 %v975
    %1011 = vmatmul.f32.gmra.mxu0 %v943
    %v1012 = vpop.f32.mrf.mxu0
    %v1013 = vadd.f32 %v993, %v1012
    %1014 = vmatmul.f32.gmra.mxu0 %v944
    %v1015 = vpop.f32.mrf.mxu0
    %v1016 = vadd.f32 %v993, %v1015
    %1017 = vmatmul.f32.gmra.mxu0 %v945
    %v1018 = vpop.f32.mrf.mxu0
    %v1019 = vadd.f32 %v993, %v1018
    %1020 = vmatmul.f32.gmra.mxu0 %v946
    %v1021 = vpop.f32.mrf.mxu0
    %v1022 = vadd.f32 %v993, %v1021
    %1023 = vmatmul.f32.gmra.mxu0 %v947
    %v1024 = vpop.f32.mrf.mxu0
    %v1025 = vadd.f32 %v993, %v1024
    %1026 = vmatmul.f32.gmra.mxu0 %v948
    %v1027 = vpop.f32.mrf.mxu0
    %v1028 = vadd.f32 %v993, %v1027
    %1029 = vmatmul.f32.gmra.mxu0 %v949
    %v1030 = vpop.f32.mrf.mxu0
    %v1031 = vadd.f32 %v993, %v1030
    %1032 = vmatmul.f32.gmra.mxu0 %v950
    %v1033 = vpop.f32.mrf.mxu0
    %v1034 = vadd.f32 %v993, %v1033
    %1035 = vmatmul.f32.gmra.mxu0 %v951
    %v1036 = vpop.f32.mrf.mxu0
    %v1037 = vadd.f32 %v993, %v1036
    %1038 = vmatmul.f32.gmra.mxu0 %v952
    %v1039 = vpop.f32.mrf.mxu0
    %v1040 = vadd.f32 %v993, %v1039
    %1041 = vmatmul.f32.gmra.mxu0 %v953
    %v1042 = vpop.f32.mrf.mxu0
    %v1043 = vadd.f32 %v993, %v1042
    %1044 = vmatmul.f32.gmra.mxu0 %v954
    %v1045 = vpop.f32.mrf.mxu0
    %v1046 = vadd.f32 %v993, %v1045
    %1047 = vmatmul.f32.gmra.mxu0 %v955
    %v1048 = vpop.f32.mrf.mxu0
    %v1049 = vadd.f32 %v993, %v1048
    %1050 = vmatmul.f32.gmra.mxu0 %v956
    %v1051 = vpop.f32.mrf.mxu0
    %v1052 = vadd.f32 %v993, %v1051
    %1053 = vmatmul.f32.gmra.mxu0 %v957
    %v1054 = vpop.f32.mrf.mxu0
    %v1055 = vadd.f32 %v993, %v1054
    %1056 = vmatmul.f32.gmra.mxu0 %v958
    %v1057 = vpop.f32.mrf.mxu0
    %v1058 = vadd.f32 %v993, %v1057
    %1059 = vmatmul.f32.gmra.mxu0 %v959
    %v1060 = vpop.f32.mrf.mxu0
    %v1061 = vadd.f32 %v993, %v1060
    %1062 = vmatmul.f32.gmra.mxu0 %v960
    %v1063 = vpop.f32.mrf.mxu0
    %v1064 = vadd.f32 %v993, %v1063
    %1065 = vmatmul.f32.gmra.mxu0 %v961
    %v1066 = vpop.f32.mrf.mxu0
    %v1067 = vadd.f32 %v993, %v1066
    %1068 = vmatmul.f32.gmra.mxu0 %v962
    %v1069 = vpop.f32.mrf.mxu0
    %v1070 = vadd.f32 %v993, %v1069
    %1071 = vmatmul.f32.gmra.mxu0 %v963
    %v1072 = vpop.f32.mrf.mxu0
    %v1073 = vadd.f32 %v993, %v1072
    %1074 = vmatmul.f32.gmra.mxu0 %v964
    %v1075 = vpop.f32.mrf.mxu0
    %v1076 = vadd.f32 %v993, %v1075
    %1077 = vmatmul.f32.gmra.mxu0 %v965
    %v1078 = vpop.f32.mrf.mxu0
    %v1079 = vadd.f32 %v993, %v1078
    %1080 = vmatmul.f32.gmra.mxu0 %v966
    %v1081 = vpop.f32.mrf.mxu0
    %v1082 = vadd.f32 %v993, %v1081
    %1083 = vmatmul.f32.gmra.mxu0 %v967
    %v1084 = vpop.f32.mrf.mxu0
    %v1085 = vadd.f32 %v993, %v1084
    %1086 = vmatmul.f32.gmra.mxu0 %v968
    %v1087 = vpop.f32.mrf.mxu0
    %v1088 = vadd.f32 %v993, %v1087
    %1089 = vmatmul.f32.gmra.mxu0 %v969
    %v1090 = vpop.f32.mrf.mxu0
    %v1091 = vadd.f32 %v993, %v1090
    %1092 = vmatmul.f32.gmra.mxu0 %v970
    %v1093 = vpop.f32.mrf.mxu0
    %v1094 = vadd.f32 %v993, %v1093
    %1095 = vmatmul.f32.gmra.mxu0 %v971
    %v1096 = vpop.f32.mrf.mxu0
    %v1097 = vadd.f32 %v993, %v1096
    %1098 = vmatmul.f32.gmra.mxu0 %v972
    %v1099 = vpop.f32.mrf.mxu0
    %v1100 = vadd.f32 %v993, %v1099
    %1101 = vmatmul.f32.gmra.mxu0 %v973
    %v1102 = vpop.f32.mrf.mxu0
    %v1103 = vadd.f32 %v993, %v1102
    %1104 = vmatmul.f32.gmra.mxu0 %v974
    %v1105 = vpop.f32.mrf.mxu0
    %v1106 = vadd.f32 %v993, %v1105
    %1107 = vdwg.mxu0
    %v1108 = vmax.f32 %v1013, 0.0
    %v1109 = vmax.f32 %v1016, 0.0
    %v1110 = vmax.f32 %v1019, 0.0
    %v1111 = vmax.f32 %v1022, 0.0
    %v1112 = vmax.f32 %v1025, 0.0
    %v1113 = vmax.f32 %v1028, 0.0
    %v1114 = vmax.f32 %v1031, 0.0
    %v1115 = vmax.f32 %v1034, 0.0
    %v1116 = vmax.f32 %v1037, 0.0
    %v1117 = vmax.f32 %v1040, 0.0
    %v1118 = vmax.f32 %v1043, 0.0
    %v1119 = vmax.f32 %v1046, 0.0
    %v1120 = vmax.f32 %v1049, 0.0
    %v1121 = vmax.f32 %v1052, 0.0
    %v1122 = vmax.f32 %v1055, 0.0
    %v1123 = vmax.f32 %v1058, 0.0
    %v1124 = vmax.f32 %v1061, 0.0
    %v1125 = vmax.f32 %v1064, 0.0
    %v1126 = vmax.f32 %v1067, 0.0
    %v1127 = vmax.f32 %v1070, 0.0
    %v1128 = vmax.f32 %v1073, 0.0
    %v1129 = vmax.f32 %v1076, 0.0
    %v1130 = vmax.f32 %v1079, 0.0
    %v1131 = vmax.f32 %v1082, 0.0
    %v1132 = vmax.f32 %v1085, 0.0
    %v1133 = vmax.f32 %v1088, 0.0
    %v1134 = vmax.f32 %v1091, 0.0
    %v1135 = vmax.f32 %v1094, 0.0
    %v1136 = vmax.f32 %v1097, 0.0
    %v1137 = vmax.f32 %v1100, 0.0
    %v1138 = vmax.f32 %v1103, 0.0
    %v1139 = vmax.f32 %v1106, 0.0
    %vm1140 = vcmask 31744
    %1141 = vst.msk [vmem:[%s11] sm:$0xff] %vm1140, %v1108
    %1142 = vst.msk [vmem:[%s11 + $0x8] sm:$0xff] %vm1140, %v1109
    %1143 = vst.msk [vmem:[%s11 + $0x10] sm:$0xff] %vm1140, %v1110
    %1144 = vst.msk [vmem:[%s11 + $0x18] sm:$0xff] %vm1140, %v1111
    %1145 = vst.msk [vmem:[%s11 + $0x20] sm:$0xff] %vm1140, %v1112
    %1146 = vst.msk [vmem:[%s11 + $0x28] sm:$0xff] %vm1140, %v1113
    %1147 = vst.msk [vmem:[%s11 + $0x30] sm:$0xff] %vm1140, %v1114
    %1148 = vst.msk [vmem:[%s11 + $0x38] sm:$0xff] %vm1140, %v1115
    %1149 = vst.msk [vmem:[%s11 + $0x40] sm:$0xff] %vm1140, %v1116
    %1150 = vst.msk [vmem:[%s11 + $0x48] sm:$0xff] %vm1140, %v1117
    %1151 = vst.msk [vmem:[%s11 + $0x50] sm:$0xff] %vm1140, %v1118
    %1152 = vst.msk [vmem:[%s11 + $0x58] sm:$0xff] %vm1140, %v1119
    %1153 = vst.msk [vmem:[%s11 + $0x60] sm:$0xff] %vm1140, %v1120
    %1154 = vst.msk [vmem:[%s11 + $0x68] sm:$0xff] %vm1140, %v1121
    %1155 = vst.msk [vmem:[%s11 + $0x70] sm:$0xff] %vm1140, %v1122
    %1156 = vst.msk [vmem:[%s11 + $0x78] sm:$0xff] %vm1140, %v1123
    %1157 = vst.msk [vmem:[%s11 + $0x80] sm:$0xff] %vm1140, %v1124
    %1158 = vst.msk [vmem:[%s11 + $0x88] sm:$0xff] %vm1140, %v1125
    %1159 = vst.msk [vmem:[%s11 + $0x90] sm:$0xff] %vm1140, %v1126
    %1160 = vst.msk [vmem:[%s11 + $0x98] sm:$0xff] %vm1140, %v1127
    %1161 = vst.msk [vmem:[%s11 + $0xa0] sm:$0xff] %vm1140, %v1128
    %1162 = vst.msk [vmem:[%s11 + $0xa8] sm:$0xff] %vm1140, %v1129
    %1163 = vst.msk [vmem:[%s11 + $0xb0] sm:$0xff] %vm1140, %v1130
    %1164 = vst.msk [vmem:[%s11 + $0xb8] sm:$0xff] %vm1140, %v1131
    %1165 = vst.msk [vmem:[%s11 + $0xc0] sm:$0xff] %vm1140, %v1132
    %1166 = vst.msk [vmem:[%s11 + $0xc8] sm:$0xff] %vm1140, %v1133
    %1167 = vst.msk [vmem:[%s11 + $0xd0] sm:$0xff] %vm1140, %v1134
    %1168 = vst.msk [vmem:[%s11 + $0xd8] sm:$0xff] %vm1140, %v1135
    %1169 = vst.msk [vmem:[%s11 + $0xe0] sm:$0xff] %vm1140, %v1136
    %1170 = vst.msk [vmem:[%s11 + $0xe8] sm:$0xff] %vm1140, %v1137
    %1171 = vst.msk [vmem:[%s11 + $0xf0] sm:$0xff] %vm1140, %v1138
    %1172 = vst.msk [vmem:[%s11 + $0xf8] sm:$0xff] %vm1140, %v1139
    // Predicated region
    $region54: #{tpu_custom_call.1} parent=1 // pred_check
      _
    $region55: #{tpu_custom_call.1} parent=1 // pred_check_branch
      %1174 = sbr.rel (0) target = $region57
    $region56: #{tpu_custom_call.1} parent=1 // pred_region
      _
    $region57: #{tpu_custom_call.1} parent=1 // pred_fallthru
      _
    // Predicated region
    $region58: #{tpu_custom_call.1} parent=1 // pred_check
      _
    $region59: #{tpu_custom_call.1} parent=1 // pred_check_branch
      %1176 = sbr.rel (0) target = $region61
    $region60: #{tpu_custom_call.1} parent=1 // pred_region
      _
    $region61: #{tpu_custom_call.1} parent=1 // pred_fallthru
      _
    %1177 = vsyncpa [#allocation3], 1
    %1178 = vsyncpa [#allocation5], 1

</llo_original>
